<compile_context>
chip_gen: v7x
topology: tpu7x:2x2x1
jax: 0.10.0
libtpu: 0.0.40
codegen_flags: <defaults>
</compile_context>

<pallas_src>
import functools

import jax
import jax.numpy as jnp
from jax.experimental import pallas as pl
from jax.experimental.pallas import tpu as pltpu


# -----------------------------------------------------------------------------
# Kernel
# -----------------------------------------------------------------------------
def mlp_kernel(x_ref, wg_ref, wu_ref, wd_ref, o_ref, acc_ref):
    j = pl.program_id(1)

    @pl.when(j == 0)
    def _init():
        acc_ref[...] = jnp.zeros_like(acc_ref)

    x = x_ref[...]                                                     # (tm, H) bf16
    # Two matmuls reuse the same x tile; f32 accumulation on the MXU.
    g = jnp.dot(x, wg_ref[...], preferred_element_type=jnp.float32)   # (tm, tn) f32
    u = jnp.dot(x, wu_ref[...], preferred_element_type=jnp.float32)   # (tm, tn) f32
    # SiLU (hidden_act == "silu") in f32 on the VPU/EUP.
    h = g * jax.nn.sigmoid(g) * u                                      # (tm, tn) f32
    # Down projection of this I-slice, accumulated in f32.
    acc_ref[...] += jnp.dot(h.astype(wd_ref.dtype), wd_ref[...],
                            preferred_element_type=jnp.float32)        # (tm, H)

    @pl.when(j == pl.num_programs(1) - 1)
    def _finalize():
        o_ref[...] = acc_ref[...].astype(o_ref.dtype)


# -----------------------------------------------------------------------------
# Tile selection helpers (pure Python, run once per shape outside of jit)
# -----------------------------------------------------------------------------
def _pick_tile(dim, target, multiples):
    """Largest divisor of `dim` that is <= target and a multiple of one of
    `multiples` (tried in preference order); falls back to the full dim
    (a full-extent block is exempt from the (8,128) rule)."""
    if dim <= target:
        return dim
    for m in multiples:
        t = (target // m) * m
        while t >= m:
            if dim % t == 0:
                return t
            t -= m
    return dim


def _vmem_resident_bytes(tm, tn, H, out_itemsize):
    """Estimated VMEM resident set: double-buffered bf16 input blocks,
    double-buffered output blocks, plus the f32 accumulator scratch."""
    bf16 = 2
    b = 2 * tm * H * bf16            # x row tile, 2 buffers
    b += 2 * H * tn * bf16 * 2       # gate + up weight tiles, 2 buffers each
    b += 2 * tn * H * bf16           # down-proj weight tile, 2 buffers
    b += 2 * tm * H * out_itemsize   # output tile, 2 buffers
    b += tm * H * 4                  # f32 accumulator scratch
    return b


def _vmem_capacity_bytes():
    try:
        return int(pltpu.get_tpu_info().vmem_capacity_bytes)
    except Exception:
        return 64 * 1024 * 1024      # conservative: v7x per-TC VMEM


def _select_tiles(M, H, I, tm_target, tn_target, out_itemsize):
    # tm: multiple of 128 preferred (dense MXU passes), 16 minimum (bf16
    # sublane pair). tn: multiple of 256 preferred (256-wide MXU on v6e/v7x),
    # 128 minimum (lane-aligned slabs, no masked stores / relayout).
    tm = _pick_tile(M, tm_target, (128, 16, 8))
    tn = _pick_tile(I, tn_target, (256, 128, 64))

    # Ensure >= 2 blocks on the "parallel" row axis when M is large enough so
    # both v7x TensorCores get work (harmless elsewhere).
    if M // max(tm, 1) < 2 and M >= 256:
        cand = _pick_tile(M, max(tm // 2, 128), (128, 16, 8))
        if cand < M and M // cand >= 2:
            tm = cand

    # Shrink tiles until the resident set fits ~85% of physical VMEM.
    cap = _vmem_capacity_bytes()
    budget = int(0.85 * cap)
    while _vmem_resident_bytes(tm, tn, H, out_itemsize) > budget:
        if tn > 256 and tn % 2 == 0 and I % (tn // 2) == 0 and (tn // 2) % 128 == 0:
            tn //= 2
        elif tm > 128 and tm % 2 == 0 and M % (tm // 2) == 0 and (tm // 2) % 16 == 0:
            tm //= 2
        else:
            break  # toy shapes / full-extent blocks: nothing left to shrink

    resident = _vmem_resident_bytes(tm, tn, H, out_itemsize)
    # Request only what we need (+ headroom), never above ~90% of physical VMEM.
    vmem_limit = min(int(0.9 * cap), max(resident + (4 << 20), 16 << 20))
    return tm, tn, vmem_limit


# -----------------------------------------------------------------------------
# Wrapper
# -----------------------------------------------------------------------------
@functools.partial(jax.jit, static_argnames=("tm", "tn", "vmem_limit"))
def _mlp_pallas_call(x, w_gate, w_up, w_down, *, tm, tn, vmem_limit):
    M, H = x.shape
    I = w_gate.shape[1]
    out_dtype = x.dtype
    compute_dtype = jnp.bfloat16
    n_i = I // tn

    # bf16 operands, f32 accumulation inside the kernel. These casts are no-ops
    # if the caller pre-casts weights to bf16 once at load time (recommended).
    xc = x.astype(compute_dtype)
    wg = w_gate.astype(compute_dtype)
    wu = w_up.astype(compute_dtype)
    wd = w_down.astype(compute_dtype)

    # Weights are streamed once per row tile: (M // tm) passes over 3*H*I bf16.
    weight_bytes = 3 * H * I * 2
    cost = pl.CostEstimate(
        flops=6 * M * H * I,                 # 4*M*H*I (gate+up) + 2*M*I*H (down)
        transcendentals=M * I,               # sigmoid
        bytes_accessed=M * H * (x.dtype.itemsize + out_dtype.itemsize)
        + (M // tm) * weight_bytes,
    )

    return pl.pallas_call(
        mlp_kernel,
        out_shape=jax.ShapeDtypeStruct((M, H), out_dtype),
        grid_spec=pltpu.PrefetchScalarGridSpec(
            num_scalar_prefetch=0,
            grid=(M // tm, n_i),
            in_specs=[
                pl.BlockSpec((tm, H), lambda i, j: (i, 0)),   # x row tile
                pl.BlockSpec((H, tn), lambda i, j: (0, j)),   # gate-proj tile
                pl.BlockSpec((H, tn), lambda i, j: (0, j)),   # up-proj tile
                pl.BlockSpec((tn, H), lambda i, j: (j, 0)),   # down-proj tile
            ],
            out_specs=pl.BlockSpec((tm, H), lambda i, j: (i, 0)),
            scratch_shapes=[pltpu.VMEM((tm, H), jnp.float32)],
        ),
        compiler_params=pltpu.CompilerParams(
            dimension_semantics=("parallel", "arbitrary"),
            vmem_limit_bytes=vmem_limit,
        ),
        cost_estimate=cost,
    )(xc, wg, wu, wd)


def mlp_pallas(x, w_gate, w_up, w_down, *, tm=512, tn=512):
    """x: (M, H); w_gate/w_up: (H, I); w_down: (I, H). I = 2*H in this module."""
    M, H = x.shape
    tm, tn, vmem_limit = _select_tiles(M, H, w_gate.shape[1], tm, tn,
                                       x.dtype.itemsize)
    return _mlp_pallas_call(x, w_gate, w_up, w_down,
                            tm=tm, tn=tn, vmem_limit=vmem_limit)


def mlp_reference(x, w_gate, w_up, w_down, compute_dtype=None):
    if compute_dtype is not None:
        x = x.astype(compute_dtype)
        w_gate = w_gate.astype(compute_dtype)
        w_up = w_up.astype(compute_dtype)
        w_down = w_down.astype(compute_dtype)
    g = jnp.dot(x, w_gate, preferred_element_type=jnp.float32)
    u = jnp.dot(x, w_up, preferred_element_type=jnp.float32)
    h = (g * jax.nn.sigmoid(g)) * u
    if compute_dtype is not None:
        h = h.astype(compute_dtype)
    return jnp.dot(h, w_down, preferred_element_type=jnp.float32)


if __name__ == "__main__":
    batch, seq, hidden = 2, 8, 32
    inter = 2 * hidden                       # intermediate_size = 2 * hidden_size

    key = jax.random.PRNGKey(0)
    kx, kg, ku, kd = jax.random.split(key, 4)

    # hidden_state as in the PyTorch module: (batch, seq, hidden)
    hidden_state = jax.random.normal(kx, (batch, seq, hidden), dtype=jnp.float32)

    # nn.Linear(in, out, bias=False) weight is (out, in); store transposed (in, out).
    scale = 0.02
    w_gate = scale * jax.random.normal(kg, (hidden, inter), dtype=jnp.float32)
    w_up = scale * jax.random.normal(ku, (hidden, inter), dtype=jnp.float32)
    w_down = scale * jax.random.normal(kd, (inter, hidden), dtype=jnp.float32)

    x2d = hidden_state.reshape(batch * seq, hidden)
    out2d = mlp_pallas(x2d, w_gate, w_up, w_down)
    out = out2d.reshape(batch, seq, hidden)
    jax.block_until_ready(out)

    # Check against a bf16-operand reference (same quantization as the kernel).
    ref_bf16 = mlp_reference(x2d, w_gate, w_up, w_down,
                             compute_dtype=jnp.bfloat16).reshape(batch, seq, hidden)
    assert jnp.allclose(out.astype(jnp.float32), ref_bf16,
                        atol=1e-4, rtol=1e-2), "mismatch vs bf16 reference"

    # Loose sanity check against the full-f32 reference (bf16 quantization noise).
    ref_f32 = mlp_reference(x2d, w_gate, w_up, w_down).reshape(batch, seq, hidden)
    rel_err = jnp.max(jnp.abs(out.astype(jnp.float32) - ref_f32)) / (
        jnp.max(jnp.abs(ref_f32)) + 1e-12)
    assert rel_err < 5e-2, f"relative error too large vs f32 reference: {rel_err}"

    print("KERNEL_OK")
</pallas_src>

<mosaic_0001>
module attributes {stable_mosaic.version = 11 : i64} {
  func.func @mlp_kernel(%arg0: i32, %arg1: i32, %arg2: memref<16x32xbf16, #tpu.memory_space<vmem>>, %arg3: memref<32x64xbf16, #tpu.memory_space<vmem>>, %arg4: memref<32x64xbf16, #tpu.memory_space<vmem>>, %arg5: memref<64x32xbf16, #tpu.memory_space<vmem>>, %arg6: memref<16x32xf32, #tpu.memory_space<vmem>>, %arg7: memref<16x32xf32, #tpu.memory_space<vmem>>) attributes {dimension_semantics = [#tpu.dimension_semantics<parallel>, #tpu.dimension_semantics<arbitrary>], iteration_bounds = array<i64: 1, 1>, scalar_prefetch = 0 : i64, scratch_operands = 1 : i64, tpu.core_type = #tpu.core_type<tc>, window_params = [{transform_indices = @transform_0, window_bounds = array<i64: 16, 32>}, {transform_indices = @transform_1, window_bounds = array<i64: 32, 64>}, {transform_indices = @transform_2, window_bounds = array<i64: 32, 64>}, {transform_indices = @transform_3, window_bounds = array<i64: 64, 32>}, {transform_indices = @transform_4, window_bounds = array<i64: 16, 32>}]} {
    %c0_i32 = arith.constant 0 : i32
    %0 = arith.cmpi eq, %arg1, %c0_i32 : i32
    %1 = arith.extui %0 : i1 to i32
    %c0_i32_0 = arith.constant 0 : i32
    %2 = arith.cmpi ne, %1, %c0_i32_0 : i32
    scf.if %2 {
      %cst_17 = arith.constant 0.000000e+00 : f32
      %24 = vector.broadcast %cst_17 : f32 to vector<16x32xf32>
      %c0_18 = arith.constant 0 : index
      %c0_19 = arith.constant 0 : index
      %25 = vector.load %arg7[%c0_18, %c0_19] : memref<16x32xf32, #tpu.memory_space<vmem>>, vector<16x32xf32>
      tpu.vector_store %arg7[%c0_18, %c0_19], %24 {strides = array<i32>} : memref<16x32xf32, #tpu.memory_space<vmem>>, vector<16x32xf32>,
    } else {
    }
    %c0 = arith.constant 0 : index
    %c0_1 = arith.constant 0 : index
    %3 = vector.load %arg2[%c0, %c0_1] : memref<16x32xbf16, #tpu.memory_space<vmem>>, vector<16x32xbf16>
    %c0_2 = arith.constant 0 : index
    %c0_3 = arith.constant 0 : index
    %4 = vector.load %arg3[%c0_2, %c0_3] : memref<32x64xbf16, #tpu.memory_space<vmem>>, vector<32x64xbf16>
    %cst = arith.constant dense<0.000000e+00> : vector<16x64xf32>
    %5 = tpu.matmul %3, %4, %cst {dimension_numbers = #tpu.dot_dimension_numbers<[1], [0], [0], [1], [0, 0, 1, 1], [], []>} : vector<16x32xbf16>, vector<32x64xbf16>, vector<16x64xf32> -> vector<16x64xf32>
    %c0_4 = arith.constant 0 : index
    %c0_5 = arith.constant 0 : index
    %6 = vector.load %arg4[%c0_4, %c0_5] : memref<32x64xbf16, #tpu.memory_space<vmem>>, vector<32x64xbf16>
    %cst_6 = arith.constant dense<0.000000e+00> : vector<16x64xf32>
    %7 = tpu.matmul %3, %6, %cst_6 {dimension_numbers = #tpu.dot_dimension_numbers<[1], [0], [0], [1], [0, 0, 1, 1], [], []>} : vector<16x32xbf16>, vector<32x64xbf16>, vector<16x64xf32> -> vector<16x64xf32>
    %8 = arith.negf %5 : vector<16x64xf32>
    %9 = math.exp %8 : vector<16x64xf32>
    %cst_7 = arith.constant 1.000000e+00 : f32
    %10 = vector.broadcast %cst_7 : f32 to vector<16x64xf32>
    %11 = arith.addf %10, %9 : vector<16x64xf32>
    %12 = arith.divf %10, %11 : vector<16x64xf32>
    %13 = arith.mulf %5, %12 : vector<16x64xf32>
    %14 = arith.mulf %13, %7 : vector<16x64xf32>
    %c0_8 = arith.constant 0 : index
    %c0_9 = arith.constant 0 : index
    %15 = vector.load %arg7[%c0_8, %c0_9] : memref<16x32xf32, #tpu.memory_space<vmem>>, vector<16x32xf32>
    %16 = arith.truncf %14 : vector<16x64xf32> to vector<16x64xbf16>
    %c0_10 = arith.constant 0 : index
    %c0_11 = arith.constant 0 : index
    %17 = vector.load %arg5[%c0_10, %c0_11] : memref<64x32xbf16, #tpu.memory_space<vmem>>, vector<64x32xbf16>
    %cst_12 = arith.constant dense<0.000000e+00> : vector<16x32xf32>
    %18 = tpu.matmul %16, %17, %cst_12 {dimension_numbers = #tpu.dot_dimension_numbers<[1], [0], [0], [1], [0, 0, 1, 1], [], []>} : vector<16x64xbf16>, vector<64x32xbf16>, vector<16x32xf32> -> vector<16x32xf32>
    %19 = arith.addf %15, %18 : vector<16x32xf32>
    %c0_13 = arith.constant 0 : index
    %c0_14 = arith.constant 0 : index
    %20 = vector.load %arg7[%c0_13, %c0_14] : memref<16x32xf32, #tpu.memory_space<vmem>>, vector<16x32xf32>
    tpu.vector_store %arg7[%c0_13, %c0_14], %19 {strides = array<i32>} : memref<16x32xf32, #tpu.memory_space<vmem>>, vector<16x32xf32>,
    %c0_i32_15 = arith.constant 0 : i32
    %21 = arith.cmpi eq, %arg1, %c0_i32_15 : i32
    %22 = arith.extui %21 : i1 to i32
    %c0_i32_16 = arith.constant 0 : i32
    %23 = arith.cmpi ne, %22, %c0_i32_16 : i32
    scf.if %23 {
      %c0_17 = arith.constant 0 : index
      %c0_18 = arith.constant 0 : index
      %24 = vector.load %arg7[%c0_17, %c0_18] : memref<16x32xf32, #tpu.memory_space<vmem>>, vector<16x32xf32>
      %c0_19 = arith.constant 0 : index
      %c0_20 = arith.constant 0 : index
      %25 = vector.load %arg6[%c0_19, %c0_20] : memref<16x32xf32, #tpu.memory_space<vmem>>, vector<16x32xf32>
      tpu.vector_store %arg6[%c0_19, %c0_20], %24 {strides = array<i32>} : memref<16x32xf32, #tpu.memory_space<vmem>>, vector<16x32xf32>,
    } else {
    }
    return
  }
  func.func @transform_0(%arg0: i32, %arg1: i32) -> (i32, i32) {
    %c0_i32 = arith.constant 0 : i32
    %c0_i32_0 = arith.constant 0 : i32
    return %arg0, %c0_i32 : i32, i32
  }
  func.func @transform_1(%arg0: i32, %arg1: i32) -> (i32, i32) {
    %c0_i32 = arith.constant 0 : i32
    %c0_i32_0 = arith.constant 0 : i32
    return %c0_i32, %arg1 : i32, i32
  }
  func.func @transform_2(%arg0: i32, %arg1: i32) -> (i32, i32) {
    %c0_i32 = arith.constant 0 : i32
    %c0_i32_0 = arith.constant 0 : i32
    return %c0_i32, %arg1 : i32, i32
  }
  func.func @transform_3(%arg0: i32, %arg1: i32) -> (i32, i32) {
    %c0_i32 = arith.constant 0 : i32
    %c0_i32_0 = arith.constant 0 : i32
    return %arg1, %c0_i32 : i32, i32
  }
  func.func @transform_4(%arg0: i32, %arg1: i32) -> (i32, i32) {
    %c0_i32 = arith.constant 0 : i32
    %c0_i32_0 = arith.constant 0 : i32
    return %arg0, %c0_i32 : i32, i32
  }
}

</mosaic_0001>

<llo_original>
// kernel: _mlp_pallas_call.1
$region0: #{_mlp_pallas_call.1}
  #allocation0 [shape = 'u32[]', space=smem, size = 0x4, offset = 0x4, fixed_abs, tag = 'smem constant byte address 0x4 - core index']
  #allocation1 [shape = 'u32[144,128]{1,0:T(1,128)}', space=vmem, size = 0x12000, scoped, tag = 'internal scratch']
  #allocation2 [shape = 'f32[16,32]{1,0:T(8,128)}', space=vmem, size = 0x2000, scoped, tag = 'scratch operand']
  %s0 = inlined_call_operand.vmem [shape: bf16[16,32], index: 0, kind: input, shape index: {}]
  %s1 = inlined_call_operand.vmem [shape: bf16[32,64], index: 1, kind: input, shape index: {}]
  %s2 = inlined_call_operand.vmem [shape: bf16[32,64], index: 2, kind: input, shape index: {}]
  %s3 = inlined_call_operand.vmem [shape: bf16[64,32], index: 3, kind: input, shape index: {}]
  %s4 = inlined_call_operand.hbm [shape: f32[16,32], index: 4, kind: output, shape index: {}]
  %s5 = sld [smem:[#allocation0]]
  $region34: #{_mlp_pallas_call.1} parent=0
    _
  %s7 = ssub.s32 1, %s5
  %s8 = scalar_select 0, %s7, %s5
  $region1: #{_mlp_pallas_call.1} parent=0
    #allocation3 [shape = 'u8[8192]{0}', space=vmem, size = 0x2000, scoped, tag = 'output window, operand 0, single buffered']
    #allocation4 [shape = 's32[1]{0}', space=sflag, size = 0x4, scoped, tag = 'scoped memory for _mlp_pallas_call.1']
    %9 = vsyncpa [#allocation4], 0
    // Predicated region
    $region2: #{_mlp_pallas_call.1} parent=1 // pred_check
      _
    $region3: #{_mlp_pallas_call.1} parent=1 // pred_check_branch
      %11 = sbr.rel (0) target = $region5
    $region4: #{_mlp_pallas_call.1} parent=1 // pred_region
      _
    $region5: #{_mlp_pallas_call.1} parent=1 // pred_fallthru
      _
    // Predicated region
    $region6: #{_mlp_pallas_call.1} parent=1 // pred_check
      _
    $region7: #{_mlp_pallas_call.1} parent=1 // pred_check_branch
      %13 = sbr.rel (0) target = $region9
    $region8: #{_mlp_pallas_call.1} parent=1 // pred_region
      _
    $region9: #{_mlp_pallas_call.1} parent=1 // pred_fallthru
      _
    // Predicated region
    $region10: #{_mlp_pallas_call.1} parent=1 // pred_check
      _
    $region11: #{_mlp_pallas_call.1} parent=1 // pred_check_branch
      %15 = sbr.rel (0) target = $region13
    $region12: #{_mlp_pallas_call.1} parent=1 // pred_region
      _
    $region13: #{_mlp_pallas_call.1} parent=1 // pred_fallthru
      _
    // Predicated region
    $region14: #{_mlp_pallas_call.1} parent=1 // pred_check
      _
    $region15: #{_mlp_pallas_call.1} parent=1 // pred_check_branch
      %17 = sbr.rel (0) target = $region17
    $region16: #{_mlp_pallas_call.1} parent=1 // pred_region
      _
    $region17: #{_mlp_pallas_call.1} parent=1 // pred_fallthru
      _
    %p19 = scmp.eq.s32.totalorder 0, 0
    // Predicated region
    $region18: #{_mlp_pallas_call.1} parent=1 // pred_check
      %p20 = pneg %p19
    $region19: #{_mlp_pallas_call.1} parent=1 // pred_check_branch
      %22 = sbr.rel (%p20) target = $region21
    $region20: #{_mlp_pallas_call.1} parent=1 // pred_region
      %vm23 = vcmask 261120
      %24 = vst.msk [vmem:[#allocation2] sm:$0xff] %vm23, 0.0
      %25 = vst.msk [vmem:[#allocation2 + $0x8] sm:$0xff] %vm23, 0.0
    $region21: #{_mlp_pallas_call.1} parent=1 // pred_fallthru
      _
    %v26 = vld [vmem:[%s0] sm:$0xf]
    %v27 = vld [vmem:[%s0 + $0x4] sm:$0xf]
    %v28 = vld [vmem:[%s1] sm:$0xf]
    %v29 = vld [vmem:[%s1 + $0x4] sm:$0xf]
    %v30 = vld [vmem:[%s1 + $0x8] sm:$0xf]
    %v31 = vld [vmem:[%s1 + $0xc] sm:$0xf]
    %v34 = vunpack.c.l.b16 %v26
    %v35 = vunpack.c.l.b16 %v27
    %v36 = vpack.c.b16 %v35, %v34
    %v41 = vunpack.c.l.b16 %v28
    %v42 = vunpack.c.l.b16 %v29
    %v43 = vunpack.c.l.b16 %v30
    %v44 = vunpack.c.l.b16 %v31
    %v45 = vpack.c.b16 %v42, %v41
    %v46 = vpack.c.b16 %v44, %v43
    %vm49 = vcmask 261120
    %v51 = vsel %vm49, %v36, 0
    %53 = vmatprep.subr.bf16.mxu0 0
    %54 = vmatpush1.bf16.msra.mxu0 %v45
    %55 = vmatprep.subr.bf16.mxu0 0
    %56 = vmatpush1.bf16.msra.mxu0 %v46
    %57 = vmatprep.subr.bf16.mxu0 0
    %58 = vmatpush1.bf16.msra.mxu0 0
    %59 = vmatprep.subr.bf16.mxu0 0
    %60 = vmatpush1.bf16.msra.mxu0 0
    %61 = vmatprep.subr.bf16.mxu0 0
    %62 = vmatpush1.bf16.msra.mxu0 0
    %63 = vmatprep.subr.bf16.mxu0 0
    %64 = vmatpush1.bf16.msra.mxu0 0
    %65 = vmatprep.subr.bf16.mxu0 0
    %66 = vmatpush1.bf16.msra.mxu0 0
    %67 = vmatprep.subr.bf16.mxu0 0
    %68 = vmatpush1.bf16.msra.mxu0 0
    %69 = vmatprep.subr.bf16.mxu0 0
    %70 = vmatpush1.bf16.msra.mxu0 0
    %71 = vmatprep.subr.bf16.mxu0 0
    %72 = vmatpush1.bf16.msra.mxu0 0
    %73 = vmatprep.subr.bf16.mxu0 0
    %74 = vmatpush1.bf16.msra.mxu0 0
    %75 = vmatprep.subr.bf16.mxu0 0
    %76 = vmatpush1.bf16.msra.mxu0 0
    %77 = vmatprep.subr.bf16.mxu0 0
    %78 = vmatpush1.bf16.msra.mxu0 0
    %79 = vmatprep.subr.bf16.mxu0 0
    %80 = vmatpush1.bf16.msra.mxu0 0
    %81 = vmatprep.subr.bf16.mxu0 0
    %82 = vmatpush1.bf16.msra.mxu0 0
    %83 = vmatprep.subr.bf16.mxu0 0
    %84 = vmatpush1.bf16.msra.mxu0 0
    %85 = vmatprep.mubr.bf16.mxu0 0
    %86 = vmatmul.mubr.bf16.gmra.mrb[0].mxu0 %v51
    %v87 = vpop.f32.mrb[0].mxu0
    %v88 = vadd.f32 0.0, %v87
    %v89 = vpop.f32.mrb[0].mxu0
    %v90 = vpop.f32.mrb[0].mxu0
    %v91 = vadd.f32 0.0, %v90
    %v92 = vpop.f32.mrb[0].mxu0
    %93 = vdwg.mxu0
    %v94 = vld [vmem:[%s2] sm:$0xf]
    %v95 = vld [vmem:[%s2 + $0x4] sm:$0xf]
    %v96 = vld [vmem:[%s2 + $0x8] sm:$0xf]
    %v97 = vld [vmem:[%s2 + $0xc] sm:$0xf]
    %v102 = vunpack.c.l.b16 %v94
    %v103 = vunpack.c.l.b16 %v95
    %v104 = vunpack.c.l.b16 %v96
    %v105 = vunpack.c.l.b16 %v97
    %v106 = vpack.c.b16 %v103, %v102
    %v107 = vpack.c.b16 %v105, %v104
    %110 = vmatprep.subr.bf16.mxu0 0
    %111 = vmatpush1.bf16.msra.mxu0 %v106
    %112 = vmatprep.subr.bf16.mxu0 0
    %113 = vmatpush1.bf16.msra.mxu0 %v107
    %114 = vmatprep.subr.bf16.mxu0 0
    %115 = vmatpush1.bf16.msra.mxu0 0
    %116 = vmatprep.subr.bf16.mxu0 0
    %117 = vmatpush1.bf16.msra.mxu0 0
    %118 = vmatprep.subr.bf16.mxu0 0
    %119 = vmatpush1.bf16.msra.mxu0 0
    %120 = vmatprep.subr.bf16.mxu0 0
    %121 = vmatpush1.bf16.msra.mxu0 0
    %122 = vmatprep.subr.bf16.mxu0 0
    %123 = vmatpush1.bf16.msra.mxu0 0
    %124 = vmatprep.subr.bf16.mxu0 0
    %125 = vmatpush1.bf16.msra.mxu0 0
    %126 = vmatprep.subr.bf16.mxu0 0
    %127 = vmatpush1.bf16.msra.mxu0 0
    %128 = vmatprep.subr.bf16.mxu0 0
    %129 = vmatpush1.bf16.msra.mxu0 0
    %130 = vmatprep.subr.bf16.mxu0 0
    %131 = vmatpush1.bf16.msra.mxu0 0
    %132 = vmatprep.subr.bf16.mxu0 0
    %133 = vmatpush1.bf16.msra.mxu0 0
    %134 = vmatprep.subr.bf16.mxu0 0
    %135 = vmatpush1.bf16.msra.mxu0 0
    %136 = vmatprep.subr.bf16.mxu0 0
    %137 = vmatpush1.bf16.msra.mxu0 0
    %138 = vmatprep.subr.bf16.mxu0 0
    %139 = vmatpush1.bf16.msra.mxu0 0
    %140 = vmatprep.subr.bf16.mxu0 0
    %141 = vmatpush1.bf16.msra.mxu0 0
    %142 = vmatprep.mubr.bf16.mxu0 0
    %143 = vmatmul.mubr.bf16.gmra.mrb[0].mxu0 %v51
    %v144 = vpop.f32.mrb[0].mxu0
    %v145 = vadd.f32 0.0, %v144
    %v146 = vpop.f32.mrb[0].mxu0
    %v147 = vpop.f32.mrb[0].mxu0
    %v148 = vadd.f32 0.0, %v147
    %v149 = vpop.f32.mrb[0].mxu0
    %150 = vdwg.mxu0
    %v151 = vxor.u32 %v88, 2147483648
    %v152 = vxor.u32 %v91, 2147483648
    %v153 = vmul.f32 %v151, 1.442695
    %v154 = vpow.pop %v153
    %v155 = vmul.f32 %v152, 1.442695
    %v156 = vpow.pop %v155
    %v157 = vadd.f32 %v154, 1.0
    %v158 = vadd.f32 %v156, 1.0
    %v159 = vrcp.pop %v157
    %v160 = vmul.f32 1.0, %v159
    %v161 = vrcp.pop %v158
    %v162 = vmul.f32 1.0, %v161
    %v163 = vmul.f32 %v88, %v160
    %v164 = vmul.f32 %v91, %v162
    %v165 = vmul.f32 %v163, %v145
    %v166 = vmul.f32 %v164, %v148
    %v167 = vld [vmem:[#allocation2] sm:$0xff]
    %v168 = vld [vmem:[#allocation2 + $0x8] sm:$0xff]
    %v169 = vpack.c.bf16 %v166, %v165
    %v170 = vld [vmem:[%s3] sm:$0xf]
    %v171 = vld [vmem:[%s3 + $0x4] sm:$0xf]
    %v172 = vld [vmem:[%s3 + $0x8] sm:$0xf]
    %v173 = vld [vmem:[%s3 + $0xc] sm:$0xf]
    %v174 = vld [vmem:[%s3 + $0x10] sm:$0xf]
    %v175 = vld [vmem:[%s3 + $0x14] sm:$0xf]
    %v176 = vld [vmem:[%s3 + $0x18] sm:$0xf]
    %v177 = vld [vmem:[%s3 + $0x1c] sm:$0xf]
    %v186 = vunpack.c.l.b16 %v170
    %v187 = vunpack.c.l.b16 %v171
    %v188 = vunpack.c.l.b16 %v172
    %v189 = vunpack.c.l.b16 %v173
    %v190 = vunpack.c.l.b16 %v174
    %v191 = vunpack.c.l.b16 %v175
    %v192 = vunpack.c.l.b16 %v176
    %v193 = vunpack.c.l.b16 %v177
    %v194 = vpack.c.b16 %v187, %v186
    %v195 = vpack.c.b16 %v189, %v188
    %v196 = vpack.c.b16 %v191, %v190
    %v197 = vpack.c.b16 %v193, %v192
    %vm202 = vcmask 523264
    %v204 = vsel %vm202, %v169, 0
    %206 = vmatprep.subr.bf16.mxu0 0
    %207 = vmatpush1.bf16.msra.mxu0 %v194
    %208 = vmatprep.subr.bf16.mxu0 0
    %209 = vmatpush1.bf16.msra.mxu0 %v195
    %210 = vmatprep.subr.bf16.mxu0 0
    %211 = vmatpush1.bf16.msra.mxu0 %v196
    %212 = vmatprep.subr.bf16.mxu0 0
    %213 = vmatpush1.bf16.msra.mxu0 %v197
    %214 = vmatprep.subr.bf16.mxu0 0
    %215 = vmatpush1.bf16.msra.mxu0 0
    %216 = vmatprep.subr.bf16.mxu0 0
    %217 = vmatpush1.bf16.msra.mxu0 0
    %218 = vmatprep.subr.bf16.mxu0 0
    %219 = vmatpush1.bf16.msra.mxu0 0
    %220 = vmatprep.subr.bf16.mxu0 0
    %221 = vmatpush1.bf16.msra.mxu0 0
    %222 = vmatprep.subr.bf16.mxu0 0
    %223 = vmatpush1.bf16.msra.mxu0 0
    %224 = vmatprep.subr.bf16.mxu0 0
    %225 = vmatpush1.bf16.msra.mxu0 0
    %226 = vmatprep.subr.bf16.mxu0 0
    %227 = vmatpush1.bf16.msra.mxu0 0
    %228 = vmatprep.subr.bf16.mxu0 0
    %229 = vmatpush1.bf16.msra.mxu0 0
    %230 = vmatprep.subr.bf16.mxu0 0
    %231 = vmatpush1.bf16.msra.mxu0 0
    %232 = vmatprep.subr.bf16.mxu0 0
    %233 = vmatpush1.bf16.msra.mxu0 0
    %234 = vmatprep.subr.bf16.mxu0 0
    %235 = vmatpush1.bf16.msra.mxu0 0
    %236 = vmatprep.subr.bf16.mxu0 0
    %237 = vmatpush1.bf16.msra.mxu0 0
    %238 = vmatprep.mubr.bf16.mxu0 0
    %239 = vmatmul.mubr.bf16.gmra.mrb[0].mxu0 %v204
    %v240 = vpop.f32.mrb[0].mxu0
    %v241 = vadd.f32 0.0, %v240
    %v242 = vpop.f32.mrb[0].mxu0
    %v243 = vpop.f32.mrb[0].mxu0
    %v244 = vadd.f32 0.0, %v243
    %v245 = vpop.f32.mrb[0].mxu0
    %246 = vdwg.mxu0
    %v247 = vadd.f32 %v167, %v241
    %v248 = vadd.f32 %v168, %v244
    %249 = vst.msk [vmem:[#allocation2] sm:$0xff] %vm49, %v247
    %250 = vst.msk [vmem:[#allocation2 + $0x8] sm:$0xff] %vm49, %v248
    // Predicated region
    $region22: #{_mlp_pallas_call.1} parent=1 // pred_check
      %p251 = pneg %p19
    $region23: #{_mlp_pallas_call.1} parent=1 // pred_check_branch
      %253 = sbr.rel (%p251) target = $region25
    $region24: #{_mlp_pallas_call.1} parent=1 // pred_region
      %v254 = vld [vmem:[#allocation2] sm:$0xff]
      %v255 = vld [vmem:[#allocation2 + $0x8] sm:$0xff]
      %256 = vst.msk [vmem:[#allocation3] sm:$0xff] %vm49, %v254
      %257 = vst.msk [vmem:[#allocation3 + $0x8] sm:$0xff] %vm49, %v255
    $region25: #{_mlp_pallas_call.1} parent=1 // pred_fallthru
      _
    // Predicated region
    $region26: #{_mlp_pallas_call.1} parent=1 // pred_check
      _
    $region27: #{_mlp_pallas_call.1} parent=1 // pred_check_branch
      %259 = sbr.rel (0) target = $region29
    $region28: #{_mlp_pallas_call.1} parent=1 // pred_region
      %s261 = ssub.s32 256, 256
      %262 = vsyncadd [#allocation4], %s261
      %s263 = sshll.u32 [#allocation3], 4
      %s264 = int_to_ptr.vmem [resolvable:$true] %s263
      %269 = dma.vmem_to_hbm [thread:$0]  %s264, 256, %s4, [#allocation4], 128, 128, 8
    $region29: #{_mlp_pallas_call.1} parent=1 // pred_fallthru
      _
    // Predicated region
    $region30: #{_mlp_pallas_call.1} parent=1 // pred_check
      _
    $region31: #{_mlp_pallas_call.1} parent=1 // pred_check_branch
      %271 = sbr.rel (0) target = $region33
    $region32: #{_mlp_pallas_call.1} parent=1 // pred_region
      %272 = dma.done [#allocation4], 256
    $region33: #{_mlp_pallas_call.1} parent=1 // pred_fallthru
      _
    %273 = vsyncpa [#allocation4], 1

</llo_original>
